<compile_context>
chip_gen: v7x
topology: tpu7x:2x2x1
jax: 0.10.0
libtpu: 0.0.40
codegen_flags: <defaults>
</compile_context>

<pallas_src>
import numpy as np
import jax
import jax.numpy as jnp
from jax.experimental import pallas as pl
from jax.experimental.pallas import tpu as pltpu


def _round_up(x, m):
    return (x + m - 1) // m * m


def _tag_box_attn_kernel(emb_ref, item_ref, w1e_ref, w1i_ref, b1_ref,
                         w2_ref, b2_ref, ones_ref, out_ref):
    PR, L = emb_ref.shape            # packed rows (block_m*TP/P), packed lanes (P*D)
    R, D = item_ref.shape            # block_m, D
    P = L // D                       # tp rows packed per 128-lane row
    G = PR // R                      # packed rows per item row (= TP // P)

    emb = emb_ref[...]                                    # (PR, L), input dtype
    emb_mm = emb.astype(jnp.bfloat16)

    # ---- layer1: block-diagonal W1e keeps the P packed tp-rows independent; the
    # item half of W1 is applied once per item row against the lane-tiled
    # [W1i|..|W1i] weight (b1 folded in), then sublane-broadcast over G rows.
    h = jnp.dot(emb_mm, w1e_ref[...], preferred_element_type=jnp.float32)     # (PR, L)
    h_item = jnp.dot(item_ref[...].astype(jnp.bfloat16), w1i_ref[...],
                     preferred_element_type=jnp.float32) + b1_ref[...]        # (R, L)
    h += jnp.broadcast_to(h_item[:, None, :], (R, G, L)).reshape(PR, L)
    h = jnp.maximum(h, 0.0)                                                   # ReLU, f32

    # ---- layer2 logits.
    logits = jnp.dot(h.astype(jnp.bfloat16), w2_ref[...],
                     preferred_element_type=jnp.float32) + b2_ref[...]        # (PR, L)

    # ---- softmax over each D-lane segment.
    # The packed-row max is constant within every segment, so subtracting it gives
    # the EXACT per-segment softmax and exp never overflows.
    m = jnp.max(logits, axis=-1, keepdims=True)
    p = jnp.exp(logits - m)                                                   # (PR, L)
    # Per-segment sum, already broadcast over its segment, via one MXU matmul with
    # a block-diagonal all-ones matrix (keeps the VPU/XLU free).
    seg_sum = jnp.dot(p.astype(jnp.bfloat16), ones_ref[...],
                      preferred_element_type=jnp.float32)                     # (PR, L)
    attn = p * pl.reciprocal(seg_sum, approx=True)

    # ---- attention-weighted embeddings, reduced over tp.
    prod = attn * emb.astype(jnp.float32)                                     # (PR, L)
    # Fold the P lane segments onto the first D lanes with cyclic rolls; the
    # covered lane set {l, l+D, ..., l+(P-1)D} is the same under either roll
    # direction convention.
    s = L // 2
    while s >= D:
        prod = prod + pltpu.roll(prod, shift=s, axis=1)
        s //= 2
    red = prod[:, :D]                                                         # (PR, D)
    if G > 1:
        red = red.reshape(R, G, D).sum(axis=1)                                # (R, D)
    out_ref[...] = red.astype(out_ref.dtype)


def tag_box_attn_inter(embeddings, item, w1, b1, w2, b2, *, block_m=2048):
    """embeddings: (B, IP, TP, D) f32/bf16, item: (B, IP, D). Returns (B, IP, D)."""
    B, IP, TP, D = embeddings.shape
    M = B * IP

    # Lane-pack factor: P tp-rows side by side on the lane axis (P*D <= 128,
    # P | TP, power of two).  P == 1 degenerates to the plain unpacked kernel.
    P = 1
    while P * 2 * D <= 128 and TP % (P * 2) == 0:
        P *= 2
    L = P * D
    G = TP // P
    emb_itemsize = embeddings.dtype.itemsize

    # ---- tile-size selection: VMEM working-set target sized for v7x (64 MiB
    # physical) with pipelining headroom; >=2 grid steps when M allows so both
    # v7x TensorCores share the "parallel" axis.
    per_row_bytes = (2 * G * L * emb_itemsize          # double-buffered emb tile
                     + 2 * D * 4 + 2 * D * 4           # item tile + output tile
                     + 6 * G * L * 4)                  # live f32 intermediates
    vmem_target = 24 * 1024 * 1024
    bm = min(int(block_m), max(8, vmem_target // per_row_bytes))
    if M > 8:
        bm = min(bm, -(-M // 2))                       # at least two grid steps
    bm = max(8, _round_up(min(bm, M), 8))
    M_pad = _round_up(M, bm)

    # ---- packed data layout (free, row-major reshape) + zero row padding.
    emb3 = embeddings.reshape(M, TP, D)
    itm = item.reshape(M, D)
    if M_pad != M:
        emb3 = jnp.pad(emb3, ((0, M_pad - M), (0, 0), (0, 0)))
        itm = jnp.pad(itm, ((0, M_pad - M), (0, 0)))
    emb_packed = emb3.reshape(M_pad * TP // P, L)      # P tp-rows per packed row

    # ---- weights.  PyTorch Linear: y = x @ W.T + b;  W1 = [W1e | W1i] over the
    # concat [emb | item].  Block-diagonal copies keep packed segments
    # independent; biases and the item weight are lane-tiled.  bf16 MXU operands,
    # f32 accumulation; biases stay f32.
    eye_p = jnp.eye(P, dtype=jnp.float32)
    w1e_bd = jnp.kron(eye_p, jnp.transpose(w1[:, :D])).astype(jnp.bfloat16)   # (L, L)
    w1i_wd = jnp.tile(jnp.transpose(w1[:, D:]), (1, P)).astype(jnp.bfloat16)  # (D, L)
    w2_bd = jnp.kron(eye_p, jnp.transpose(w2)).astype(jnp.bfloat16)           # (L, L)
    ones_bd = jnp.kron(eye_p, jnp.ones((D, D), jnp.float32)).astype(jnp.bfloat16)
    b1t = jnp.tile(b1.reshape(1, D).astype(jnp.float32), (1, P))              # (1, L)
    b2t = jnp.tile(b2.reshape(1, D).astype(jnp.float32), (1, P))              # (1, L)

    grid = (M_pad // bm,)
    PR_tot = M_pad * TP // P
    PR_blk = bm * TP // P

    flops = (6 * PR_tot * L * L            # layer1-emb, layer2, segment-sum matmuls
             + 2 * M_pad * D * L           # layer1-item matmul
             + 14 * PR_tot * L)            # elementwise
    bytes_accessed = (PR_tot * L * emb_itemsize + 2 * M_pad * D * 4
                      + 3 * L * L * 2 + D * L * 2 + 2 * L * 4)
    cost = pl.CostEstimate(flops=int(flops), transcendentals=int(PR_tot * L),
                           bytes_accessed=int(bytes_accessed))

    const_bytes = 2 * (3 * L * L * 2 + D * L * 2 + 2 * L * 4)
    vmem_est = per_row_bytes * bm + const_bytes
    vmem_limit = int(min(60 * 1024 * 1024,
                         max(32 * 1024 * 1024, int(1.5 * vmem_est))))

    out = pl.pallas_call(
        _tag_box_attn_kernel,
        out_shape=jax.ShapeDtypeStruct((M_pad, D), embeddings.dtype),
        grid_spec=pltpu.PrefetchScalarGridSpec(
            num_scalar_prefetch=0,
            grid=grid,
            in_specs=[
                pl.BlockSpec((PR_blk, L), lambda i: (i, 0)),   # packed embeddings
                pl.BlockSpec((bm, D), lambda i: (i, 0)),       # item
                pl.BlockSpec((L, L), lambda i: (0, 0)),        # W1 emb half (block-diag)
                pl.BlockSpec((D, L), lambda i: (0, 0)),        # W1 item half (lane-tiled)
                pl.BlockSpec((1, L), lambda i: (0, 0)),        # b1 (lane-tiled)
                pl.BlockSpec((L, L), lambda i: (0, 0)),        # W2 (block-diag)
                pl.BlockSpec((1, L), lambda i: (0, 0)),        # b2 (lane-tiled)
                pl.BlockSpec((L, L), lambda i: (0, 0)),        # block-diag ones
            ],
            out_specs=pl.BlockSpec((bm, D), lambda i: (i, 0)),
        ),
        compiler_params=pltpu.CompilerParams(
            dimension_semantics=("parallel",),
            vmem_limit_bytes=vmem_limit),
        cost_estimate=cost,
    )(emb_packed, itm, w1e_bd, w1i_wd, b1t, w2_bd, b2t, ones_bd)
    return out[:M].reshape(B, IP, D)


def _reference(embeddings, item, w1, b1, w2, b2):
    B, IP, TP, D = embeddings.shape
    item_b = jnp.broadcast_to(item[:, :, None, :], (B, IP, TP, D))
    x = jnp.concatenate([embeddings, item_b], axis=-1)           # (B, IP, TP, 2D)
    h = jax.nn.relu(x @ w1.T + b1)
    attn = jax.nn.softmax(h @ w2.T + b2, axis=-1)
    return jnp.sum(attn * embeddings, axis=-2)


def _xavier_uniform(key, shape):
    fan_out, fan_in = shape
    bound = np.sqrt(6.0 / (fan_in + fan_out))
    return jax.random.uniform(key, shape, jnp.float32, -bound, bound)


if __name__ == "__main__":
    B, IP, TP, D = 2, 4, 8, 32
    key = jax.random.PRNGKey(0)
    k_emb, k_item, k_w1, k_b1, k_w2, k_b2 = jax.random.split(key, 6)

    embeddings = jax.random.normal(k_emb, (B, IP, TP, D), jnp.float32)
    item = jax.random.normal(k_item, (B, IP, D), jnp.float32)

    # nn.Linear(dim*2, dim) / nn.Linear(dim, dim) with xavier_uniform_ weights and
    # default (uniform) bias init — deterministic, synthetic parameters.
    w1 = _xavier_uniform(k_w1, (D, 2 * D))
    b1 = jax.random.uniform(k_b1, (D,), jnp.float32,
                            -1.0 / np.sqrt(2 * D), 1.0 / np.sqrt(2 * D))
    w2 = _xavier_uniform(k_w2, (D, D))
    b2 = jax.random.uniform(k_b2, (D,), jnp.float32,
                            -1.0 / np.sqrt(D), 1.0 / np.sqrt(D))

    out = tag_box_attn_inter(embeddings, item, w1, b1, w2, b2)
    out = jax.block_until_ready(out)

    ref = _reference(embeddings, item, w1, b1, w2, b2)
    # Tolerance reflects bf16 MXU operands (incl. the bf16 segment-sum matmul) and
    # the approx-reciprocal softmax divide; a semantic bug (wrong axis / missing
    # bias / transposed weight) would still blow this.
    np.testing.assert_allclose(np.asarray(out), np.asarray(ref),
                               rtol=5e-2, atol=5e-2)
    print("KERNEL_OK")
</pallas_src>

<mosaic_0001>
module attributes {stable_mosaic.version = 11 : i64} {
  func.func @_tag_box_attn_kernel(%arg0: i32, %arg1: memref<16x128xf32, #tpu.memory_space<vmem>>, %arg2: memref<8x32xf32, #tpu.memory_space<vmem>>, %arg3: memref<128x128xbf16, #tpu.memory_space<vmem>>, %arg4: memref<32x128xbf16, #tpu.memory_space<vmem>>, %arg5: memref<1x128xf32, #tpu.memory_space<vmem>>, %arg6: memref<128x128xbf16, #tpu.memory_space<vmem>>, %arg7: memref<1x128xf32, #tpu.memory_space<vmem>>, %arg8: memref<128x128xbf16, #tpu.memory_space<vmem>>, %arg9: memref<8x32xf32, #tpu.memory_space<vmem>>) attributes {dimension_semantics = [#tpu.dimension_semantics<parallel>], iteration_bounds = array<i64: 1>, scalar_prefetch = 0 : i64, scratch_operands = 0 : i64, tpu.core_type = #tpu.core_type<tc>, window_params = [{transform_indices = @transform_0, window_bounds = array<i64: 16, 128>}, {transform_indices = @transform_1, window_bounds = array<i64: 8, 32>}, {pipeline_mode = #tpu.pipeline_mode<synchronous>, transform_indices = @transform_2, window_bounds = array<i64: 128, 128>}, {pipeline_mode = #tpu.pipeline_mode<synchronous>, transform_indices = @transform_3, window_bounds = array<i64: 32, 128>}, {pipeline_mode = #tpu.pipeline_mode<synchronous>, transform_indices = @transform_4, window_bounds = array<i64: 1, 128>}, {pipeline_mode = #tpu.pipeline_mode<synchronous>, transform_indices = @transform_5, window_bounds = array<i64: 128, 128>}, {pipeline_mode = #tpu.pipeline_mode<synchronous>, transform_indices = @transform_6, window_bounds = array<i64: 1, 128>}, {pipeline_mode = #tpu.pipeline_mode<synchronous>, transform_indices = @transform_7, window_bounds = array<i64: 128, 128>}, {transform_indices = @transform_8, window_bounds = array<i64: 8, 32>}]} {
    %c0 = arith.constant 0 : index
    %c0_0 = arith.constant 0 : index
    %0 = vector.load %arg1[%c0, %c0_0] : memref<16x128xf32, #tpu.memory_space<vmem>>, vector<16x128xf32>
    %1 = arith.truncf %0 : vector<16x128xf32> to vector<16x128xbf16>
    %c0_1 = arith.constant 0 : index
    %c0_2 = arith.constant 0 : index
    %2 = vector.load %arg3[%c0_1, %c0_2] : memref<128x128xbf16, #tpu.memory_space<vmem>>, vector<128x128xbf16>
    %cst = arith.constant dense<0.000000e+00> : vector<16x128xf32>
    %3 = tpu.matmul %1, %2, %cst {dimension_numbers = #tpu.dot_dimension_numbers<[1], [0], [0], [1], [0, 0, 1, 1], [], []>} : vector<16x128xbf16>, vector<128x128xbf16>, vector<16x128xf32> -> vector<16x128xf32>
    %c0_3 = arith.constant 0 : index
    %c0_4 = arith.constant 0 : index
    %4 = vector.load %arg2[%c0_3, %c0_4] : memref<8x32xf32, #tpu.memory_space<vmem>>, vector<8x32xf32>
    %5 = arith.truncf %4 : vector<8x32xf32> to vector<8x32xbf16>
    %c0_5 = arith.constant 0 : index
    %c0_6 = arith.constant 0 : index
    %6 = vector.load %arg4[%c0_5, %c0_6] : memref<32x128xbf16, #tpu.memory_space<vmem>>, vector<32x128xbf16>
    %cst_7 = arith.constant dense<0.000000e+00> : vector<8x128xf32>
    %7 = tpu.matmul %5, %6, %cst_7 {dimension_numbers = #tpu.dot_dimension_numbers<[1], [0], [0], [1], [0, 0, 1, 1], [], []>} : vector<8x32xbf16>, vector<32x128xbf16>, vector<8x128xf32> -> vector<8x128xf32>
    %c0_8 = arith.constant 0 : index
    %c0_9 = arith.constant 0 : index
    %8 = vector.load %arg5[%c0_8, %c0_9] : memref<1x128xf32, #tpu.memory_space<vmem>>, vector<1x128xf32>
    %9 = vector.broadcast %8 : vector<1x128xf32> to vector<8x128xf32>
    %10 = arith.addf %7, %9 : vector<8x128xf32>
    %11 = vector.shape_cast %10 : vector<8x128xf32> to vector<8x1x128xf32>
    %12 = vector.shape_cast %11 : vector<8x1x128xf32> to vector<8x1x128xf32>
    %13 = vector.broadcast %12 : vector<8x1x128xf32> to vector<8x2x128xf32>
    %14 = vector.shape_cast %13 : vector<8x2x128xf32> to vector<16x128xf32>
    %15 = arith.addf %3, %14 : vector<16x128xf32>
    %cst_10 = arith.constant 0.000000e+00 : f32
    %16 = vector.broadcast %cst_10 : f32 to vector<16x128xf32>
    %17 = arith.maximumf %15, %16 : vector<16x128xf32>
    %18 = arith.truncf %17 : vector<16x128xf32> to vector<16x128xbf16>
    %c0_11 = arith.constant 0 : index
    %c0_12 = arith.constant 0 : index
    %19 = vector.load %arg6[%c0_11, %c0_12] : memref<128x128xbf16, #tpu.memory_space<vmem>>, vector<128x128xbf16>
    %cst_13 = arith.constant dense<0.000000e+00> : vector<16x128xf32>
    %20 = tpu.matmul %18, %19, %cst_13 {dimension_numbers = #tpu.dot_dimension_numbers<[1], [0], [0], [1], [0, 0, 1, 1], [], []>} : vector<16x128xbf16>, vector<128x128xbf16>, vector<16x128xf32> -> vector<16x128xf32>
    %c0_14 = arith.constant 0 : index
    %c0_15 = arith.constant 0 : index
    %21 = vector.load %arg7[%c0_14, %c0_15] : memref<1x128xf32, #tpu.memory_space<vmem>>, vector<1x128xf32>
    %22 = vector.broadcast %21 : vector<1x128xf32> to vector<16x128xf32>
    %23 = arith.addf %20, %22 : vector<16x128xf32>
    %cst_16 = arith.constant dense<0xFF800000> : vector<16xf32>
    %24 = vector.multi_reduction <maximumf>, %23, %cst_16 [1] : vector<16x128xf32> to vector<16xf32>
    %25 = vector.shape_cast %24 : vector<16xf32> to vector<16x1xf32>
    %26 = vector.broadcast %25 : vector<16x1xf32> to vector<16x128xf32>
    %27 = arith.subf %23, %26 : vector<16x128xf32>
    %28 = math.exp %27 : vector<16x128xf32>
    %29 = arith.truncf %28 : vector<16x128xf32> to vector<16x128xbf16>
    %c0_17 = arith.constant 0 : index
    %c0_18 = arith.constant 0 : index
    %30 = vector.load %arg8[%c0_17, %c0_18] : memref<128x128xbf16, #tpu.memory_space<vmem>>, vector<128x128xbf16>
    %cst_19 = arith.constant dense<0.000000e+00> : vector<16x128xf32>
    %31 = tpu.matmul %29, %30, %cst_19 {dimension_numbers = #tpu.dot_dimension_numbers<[1], [0], [0], [1], [0, 0, 1, 1], [], []>} : vector<16x128xbf16>, vector<128x128xbf16>, vector<16x128xf32> -> vector<16x128xf32>
    %32 = tpu.reciprocal %31 {approx = true} : vector<16x128xf32> -> vector<16x128xf32>
    %33 = arith.mulf %28, %32 : vector<16x128xf32>
    %34 = arith.mulf %33, %0 : vector<16x128xf32>
    %c64_i32 = arith.constant 64 : i32
    %35 = tpu.dynamic_rotate %34 by %c64_i32 dim 1 : vector<16x128xf32>, i32 -> vector<16x128xf32>
    %36 = arith.addf %34, %35 : vector<16x128xf32>
    %c32_i32 = arith.constant 32 : i32
    %37 = tpu.dynamic_rotate %36 by %c32_i32 dim 1 : vector<16x128xf32>, i32 -> vector<16x128xf32>
    %38 = arith.addf %36, %37 : vector<16x128xf32>
    %39 = vector.extract_strided_slice %38 {offsets = [0, 0], sizes = [16, 32], strides = [1, 1]} : vector<16x128xf32> to vector<16x32xf32>
    %40 = vector.shape_cast %39 : vector<16x32xf32> to vector<8x2x32xf32>
    %cst_20 = arith.constant dense<0.000000e+00> : vector<8x32xf32>
    %41 = vector.multi_reduction <add>, %40, %cst_20 [1] : vector<8x2x32xf32> to vector<8x32xf32>
    %c0_21 = arith.constant 0 : index
    %c0_22 = arith.constant 0 : index
    %42 = vector.load %arg9[%c0_21, %c0_22] : memref<8x32xf32, #tpu.memory_space<vmem>>, vector<8x32xf32>
    tpu.vector_store %arg9[%c0_21, %c0_22], %41 {strides = array<i32>} : memref<8x32xf32, #tpu.memory_space<vmem>>, vector<8x32xf32>,
    return
  }
  func.func @transform_0(%arg0: i32) -> (i32, i32) {
    %c0_i32 = arith.constant 0 : i32
    %c0_i32_0 = arith.constant 0 : i32
    return %arg0, %c0_i32 : i32, i32
  }
  func.func @transform_1(%arg0: i32) -> (i32, i32) {
    %c0_i32 = arith.constant 0 : i32
    %c0_i32_0 = arith.constant 0 : i32
    return %arg0, %c0_i32 : i32, i32
  }
  func.func @transform_2(%arg0: i32) -> (i32, i32) {
    %c0_i32 = arith.constant 0 : i32
    %c0_i32_0 = arith.constant 0 : i32
    %c0_i32_1 = arith.constant 0 : i32
    return %c0_i32, %c0_i32_0 : i32, i32
  }
  func.func @transform_3(%arg0: i32) -> (i32, i32) {
    %c0_i32 = arith.constant 0 : i32
    %c0_i32_0 = arith.constant 0 : i32
    %c0_i32_1 = arith.constant 0 : i32
    return %c0_i32, %c0_i32_0 : i32, i32
  }
  func.func @transform_4(%arg0: i32) -> (i32, i32) {
    %c0_i32 = arith.constant 0 : i32
    %c0_i32_0 = arith.constant 0 : i32
    %c0_i32_1 = arith.constant 0 : i32
    return %c0_i32, %c0_i32_0 : i32, i32
  }
  func.func @transform_5(%arg0: i32) -> (i32, i32) {
    %c0_i32 = arith.constant 0 : i32
    %c0_i32_0 = arith.constant 0 : i32
    %c0_i32_1 = arith.constant 0 : i32
    return %c0_i32, %c0_i32_0 : i32, i32
  }
  func.func @transform_6(%arg0: i32) -> (i32, i32) {
    %c0_i32 = arith.constant 0 : i32
    %c0_i32_0 = arith.constant 0 : i32
    %c0_i32_1 = arith.constant 0 : i32
    return %c0_i32, %c0_i32_0 : i32, i32
  }
  func.func @transform_7(%arg0: i32) -> (i32, i32) {
    %c0_i32 = arith.constant 0 : i32
    %c0_i32_0 = arith.constant 0 : i32
    %c0_i32_1 = arith.constant 0 : i32
    return %c0_i32, %c0_i32_0 : i32, i32
  }
  func.func @transform_8(%arg0: i32) -> (i32, i32) {
    %c0_i32 = arith.constant 0 : i32
    %c0_i32_0 = arith.constant 0 : i32
    return %arg0, %c0_i32 : i32, i32
  }
}

</mosaic_0001>

<llo_original>
// kernel: tpu_custom_call.1
$region0: #{tpu_custom_call.1}
  #allocation0 [shape = 'u32[]', space=smem, size = 0x4, offset = 0x4, fixed_abs, tag = 'smem constant byte address 0x4 - core index']
  #allocation1 [shape = 'u32[144,128]{1,0:T(1,128)}', space=vmem, size = 0x12000, scoped, tag = 'internal scratch']
  %s0 = inlined_call_operand.hbm [shape: f32[16,128], index: 0, kind: input, shape index: {}]
  %s1 = inlined_call_operand.hbm [shape: f32[8,32], index: 1, kind: input, shape index: {}]
  %s2 = inlined_call_operand.hbm [shape: bf16[128,128], index: 2, kind: input, shape index: {}]
  %s3 = inlined_call_operand.hbm [shape: bf16[32,128], index: 3, kind: input, shape index: {}]
  %s4 = inlined_call_operand.vmem [shape: f32[1,128], index: 4, kind: input, shape index: {}]
  %s5 = inlined_call_operand.hbm [shape: bf16[128,128], index: 5, kind: input, shape index: {}]
  %s6 = inlined_call_operand.vmem [shape: f32[1,128], index: 6, kind: input, shape index: {}]
  %s7 = inlined_call_operand.hbm [shape: bf16[128,128], index: 7, kind: input, shape index: {}]
  %s8 = inlined_call_operand.hbm [shape: f32[8,32], index: 8, kind: output, shape index: {}]
  %s9 = sld [smem:[#allocation0]]
  $region66: #{tpu_custom_call.1} parent=0
    _
  %s11 = ssub.s32 1, %s9
  %s12 = scalar_select 0, %s11, %s9
  $region1: #{tpu_custom_call.1} parent=0
    #allocation2 [shape = 'u8[8192]{0}', space=vmem, size = 0x2000, scoped, tag = 'input window, operand 0, single buffered']
    #allocation3 [shape = 's32[1]{0}', space=sflag, size = 0x4, scoped, tag = 'scoped memory for tpu_custom_call.1']
    #allocation4 [shape = 's32[1]{0}', space=sflag, size = 0x4, scoped, tag = 'scoped memory for tpu_custom_call.1']
    #allocation5 [shape = 'u8[4096]{0}', space=vmem, size = 0x1000, scoped, tag = 'input window, operand 1, single buffered']
    #allocation6 [shape = 's32[1]{0}', space=sflag, size = 0x4, scoped, tag = 'scoped memory for tpu_custom_call.1']
    #allocation7 [shape = 'u8[32768]{0}', space=vmem, size = 0x8000, scoped, tag = 'input window, operand 2, single buffered']
    #allocation8 [shape = 'u8[8192]{0}', space=vmem, size = 0x2000, scoped, tag = 'input window, operand 3, single buffered']
    #allocation9 [shape = 's32[1]{0}', space=sflag, size = 0x4, scoped, tag = 'scoped memory for tpu_custom_call.1']
    #allocation10 [shape = 'u8[32768]{0}', space=vmem, size = 0x8000, scoped, tag = 'input window, operand 5, single buffered']
    #allocation11 [shape = 'u8[32768]{0}', space=vmem, size = 0x8000, scoped, tag = 'input window, operand 7, single buffered']
    #allocation12 [shape = 's32[1]{0}', space=sflag, size = 0x4, scoped, tag = 'scoped memory for tpu_custom_call.1']
    #allocation13 [shape = 'u8[4096]{0}', space=vmem, size = 0x1000, scoped, tag = 'output window, operand 0, single buffered']
    %13 = vsyncpa [#allocation3], 0
    %14 = vsyncpa [#allocation6], 0
    %15 = vsyncpa [#allocation9], 0
    %16 = vsyncpa [#allocation12], 0
    %17 = vsyncpa [#allocation4], 0
    // Predicated region
    $region2: #{tpu_custom_call.1} parent=1 // pred_check
      _
    $region3: #{tpu_custom_call.1} parent=1 // pred_check_branch
      %19 = sbr.rel (0) target = $region5
    $region4: #{tpu_custom_call.1} parent=1 // pred_region
      %s21 = ssub.s32 256, 256
      %22 = vsyncadd [#allocation3], %s21
      %s23 = sshll.u32 [#allocation2], 4
      %s24 = int_to_ptr.vmem [resolvable:$true] %s23
      %29 = dma.hbm_to_vmem [thread:$0]  %s0, 256, %s24, [#allocation3], 128, 128, 8
    $region5: #{tpu_custom_call.1} parent=1 // pred_fallthru
      _
    // Predicated region
    $region6: #{tpu_custom_call.1} parent=1 // pred_check
      _
    $region7: #{tpu_custom_call.1} parent=1 // pred_check_branch
      %31 = sbr.rel (0) target = $region9
    $region8: #{tpu_custom_call.1} parent=1 // pred_region
      %s33 = ssub.s32 128, 128
      %34 = vsyncadd [#allocation6], %s33
      %s36 = sshll.u32 [#allocation5], 4
      %s37 = int_to_ptr.vmem [resolvable:$true] %s36
      %39 = dma.hbm_to_vmem [thread:$0]  %s1, 128, %s37, [#allocation6]
    $region9: #{tpu_custom_call.1} parent=1 // pred_fallthru
      _
    // Predicated region
    $region10: #{tpu_custom_call.1} parent=1 // pred_check
      _
    $region11: #{tpu_custom_call.1} parent=1 // pred_check_branch
      %41 = sbr.rel (0) target = $region13
    $region12: #{tpu_custom_call.1} parent=1 // pred_region
      %s43 = ssub.s32 1024, 1024
      %44 = vsyncadd [#allocation6], %s43
      %s45 = sshll.u32 [#allocation7], 4
      %s46 = int_to_ptr.vmem [resolvable:$true] %s45
      %51 = dma.hbm_to_vmem [thread:$0]  %s2, 1024, %s46, [#allocation6], 64, 64, 4
    $region13: #{tpu_custom_call.1} parent=1 // pred_fallthru
      _
    // Predicated region
    $region14: #{tpu_custom_call.1} parent=1 // pred_check
      _
    $region15: #{tpu_custom_call.1} parent=1 // pred_check_branch
      %53 = sbr.rel (0) target = $region17
    $region16: #{tpu_custom_call.1} parent=1 // pred_region
      %s55 = ssub.s32 256, 256
      %56 = vsyncadd [#allocation9], %s55
      %s57 = sshll.u32 [#allocation8], 4
      %s58 = int_to_ptr.vmem [resolvable:$true] %s57
      %63 = dma.hbm_to_vmem [thread:$0]  %s3, 256, %s58, [#allocation9], 64, 64, 4
    $region17: #{tpu_custom_call.1} parent=1 // pred_fallthru
      _
    // Predicated region
    $region18: #{tpu_custom_call.1} parent=1 // pred_check
      _
    $region19: #{tpu_custom_call.1} parent=1 // pred_check_branch
      %65 = sbr.rel (0) target = $region21
    $region20: #{tpu_custom_call.1} parent=1 // pred_region
      _
    $region21: #{tpu_custom_call.1} parent=1 // pred_fallthru
      _
    // Predicated region
    $region22: #{tpu_custom_call.1} parent=1 // pred_check
      _
    $region23: #{tpu_custom_call.1} parent=1 // pred_check_branch
      %67 = sbr.rel (0) target = $region25
    $region24: #{tpu_custom_call.1} parent=1 // pred_region
      %s69 = ssub.s32 1024, 1024
      %70 = vsyncadd [#allocation9], %s69
      %s71 = sshll.u32 [#allocation10], 4
      %s72 = int_to_ptr.vmem [resolvable:$true] %s71
      %77 = dma.hbm_to_vmem [thread:$0]  %s5, 1024, %s72, [#allocation9], 64, 64, 4
    $region25: #{tpu_custom_call.1} parent=1 // pred_fallthru
      _
    // Predicated region
    $region26: #{tpu_custom_call.1} parent=1 // pred_check
      _
    $region27: #{tpu_custom_call.1} parent=1 // pred_check_branch
      %79 = sbr.rel (0) target = $region29
    $region28: #{tpu_custom_call.1} parent=1 // pred_region
      _
    $region29: #{tpu_custom_call.1} parent=1 // pred_fallthru
      _
    // Predicated region
    $region30: #{tpu_custom_call.1} parent=1 // pred_check
      _
    $region31: #{tpu_custom_call.1} parent=1 // pred_check_branch
      %81 = sbr.rel (0) target = $region33
    $region32: #{tpu_custom_call.1} parent=1 // pred_region
      %s83 = ssub.s32 1024, 1024
      %84 = vsyncadd [#allocation12], %s83
      %s85 = sshll.u32 [#allocation11], 4
      %s86 = int_to_ptr.vmem [resolvable:$true] %s85
      %91 = dma.hbm_to_vmem [thread:$0]  %s7, 1024, %s86, [#allocation12], 64, 64, 4
    $region33: #{tpu_custom_call.1} parent=1 // pred_fallthru
      _
    // Predicated region
    $region34: #{tpu_custom_call.1} parent=1 // pred_check
      _
    $region35: #{tpu_custom_call.1} parent=1 // pred_check_branch
      %93 = sbr.rel (0) target = $region37
    $region36: #{tpu_custom_call.1} parent=1 // pred_region
      %94 = dma.done [#allocation3], 256
    $region37: #{tpu_custom_call.1} parent=1 // pred_fallthru
      _
    // Predicated region
    $region38: #{tpu_custom_call.1} parent=1 // pred_check
      _
    $region39: #{tpu_custom_call.1} parent=1 // pred_check_branch
      %96 = sbr.rel (0) target = $region41
    $region40: #{tpu_custom_call.1} parent=1 // pred_region
      %97 = dma.done [#allocation6], 128
    $region41: #{tpu_custom_call.1} parent=1 // pred_fallthru
      _
    // Predicated region
    $region42: #{tpu_custom_call.1} parent=1 // pred_check
      _
    $region43: #{tpu_custom_call.1} parent=1 // pred_check_branch
      %99 = sbr.rel (0) target = $region45
    $region44: #{tpu_custom_call.1} parent=1 // pred_region
      %100 = dma.done [#allocation6], 1024
    $region45: #{tpu_custom_call.1} parent=1 // pred_fallthru
      _
    // Predicated region
    $region46: #{tpu_custom_call.1} parent=1 // pred_check
      _
    $region47: #{tpu_custom_call.1} parent=1 // pred_check_branch
      %102 = sbr.rel (0) target = $region49
    $region48: #{tpu_custom_call.1} parent=1 // pred_region
      %103 = dma.done [#allocation9], 256
    $region49: #{tpu_custom_call.1} parent=1 // pred_fallthru
      _
    // Predicated region
    $region50: #{tpu_custom_call.1} parent=1 // pred_check
      _
    $region51: #{tpu_custom_call.1} parent=1 // pred_check_branch
      %105 = sbr.rel (0) target = $region53
    $region52: #{tpu_custom_call.1} parent=1 // pred_region
      %106 = dma.done [#allocation9], 1024
    $region53: #{tpu_custom_call.1} parent=1 // pred_fallthru
      _
    // Predicated region
    $region54: #{tpu_custom_call.1} parent=1 // pred_check
      _
    $region55: #{tpu_custom_call.1} parent=1 // pred_check_branch
      %108 = sbr.rel (0) target = $region57
    $region56: #{tpu_custom_call.1} parent=1 // pred_region
      %109 = dma.done [#allocation12], 1024
    $region57: #{tpu_custom_call.1} parent=1 // pred_fallthru
      _
    %v111 = vld [vmem:[#allocation2] sm:$0xff]
    %v112 = vld [vmem:[#allocation2 + $0x8] sm:$0xff]
    %v113 = vpack.c.bf16 %v112, %v111
    %v114 = vld [vmem:[#allocation7] sm:$0xf]
    %v115 = vld [vmem:[#allocation7 + $0x4] sm:$0xf]
    %v116 = vld [vmem:[#allocation7 + $0x8] sm:$0xf]
    %v117 = vld [vmem:[#allocation7 + $0xc] sm:$0xf]
    %v118 = vld [vmem:[#allocation7 + $0x10] sm:$0xf]
    %v119 = vld [vmem:[#allocation7 + $0x14] sm:$0xf]
    %v120 = vld [vmem:[#allocation7 + $0x18] sm:$0xf]
    %v121 = vld [vmem:[#allocation7 + $0x1c] sm:$0xf]
    %v122 = vld [vmem:[#allocation7 + $0x20] sm:$0xf]
    %v123 = vld [vmem:[#allocation7 + $0x24] sm:$0xf]
    %v124 = vld [vmem:[#allocation7 + $0x28] sm:$0xf]
    %v125 = vld [vmem:[#allocation7 + $0x2c] sm:$0xf]
    %v126 = vld [vmem:[#allocation7 + $0x30] sm:$0xf]
    %v127 = vld [vmem:[#allocation7 + $0x34] sm:$0xf]
    %v128 = vld [vmem:[#allocation7 + $0x38] sm:$0xf]
    %v129 = vld [vmem:[#allocation7 + $0x3c] sm:$0xf]
    %v130 = vld [vmem:[#allocation5] sm:$0xff]
    %v131 = vpack.c.bf16 %v130, %v130
    %v132 = vld [vmem:[#allocation8] sm:$0xf]
    %v133 = vld [vmem:[#allocation8 + $0x4] sm:$0xf]
    %v134 = vld [vmem:[#allocation8 + $0x8] sm:$0xf]
    %v135 = vld [vmem:[#allocation8 + $0xc] sm:$0xf]
    %v136 = vld [vmem:[%s4] sm:$0x1]
    %v138 = vlaneseq
    %v139 = vshrl.u32 %v138, 7
    %v140 = vsub.s32 0, %v139
    %v141 = vrot.slane %v136, %v140
    %v147 = vunpack.c.l.b16 %v132
    %v148 = vunpack.c.l.b16 %v133
    %v149 = vunpack.c.l.b16 %v134
    %v150 = vunpack.c.l.b16 %v135
    %v151 = vpack.c.b16 %v148, %v147
    %v152 = vpack.c.b16 %v150, %v149
    %vm155 = vcmask 261120
    %v157 = vsel %vm155, %v131, 0
    %159 = vmatprep.subr.bf16.mxu0 0
    %160 = vmatpush1.bf16.msra.mxu0 %v151
    %161 = vmatprep.subr.bf16.mxu0 0
    %162 = vmatpush1.bf16.msra.mxu0 %v152
    %163 = vmatprep.subr.bf16.mxu0 0
    %164 = vmatpush1.bf16.msra.mxu0 0
    %165 = vmatprep.subr.bf16.mxu0 0
    %166 = vmatpush1.bf16.msra.mxu0 0
    %167 = vmatprep.subr.bf16.mxu0 0
    %168 = vmatpush1.bf16.msra.mxu0 0
    %169 = vmatprep.subr.bf16.mxu0 0
    %170 = vmatpush1.bf16.msra.mxu0 0
    %171 = vmatprep.subr.bf16.mxu0 0
    %172 = vmatpush1.bf16.msra.mxu0 0
    %173 = vmatprep.subr.bf16.mxu0 0
    %174 = vmatpush1.bf16.msra.mxu0 0
    %175 = vmatprep.subr.bf16.mxu0 0
    %176 = vmatpush1.bf16.msra.mxu0 0
    %177 = vmatprep.subr.bf16.mxu0 0
    %178 = vmatpush1.bf16.msra.mxu0 0
    %179 = vmatprep.subr.bf16.mxu0 0
    %180 = vmatpush1.bf16.msra.mxu0 0
    %181 = vmatprep.subr.bf16.mxu0 0
    %182 = vmatpush1.bf16.msra.mxu0 0
    %183 = vmatprep.subr.bf16.mxu0 0
    %184 = vmatpush1.bf16.msra.mxu0 0
    %185 = vmatprep.subr.bf16.mxu0 0
    %186 = vmatpush1.bf16.msra.mxu0 0
    %187 = vmatprep.subr.bf16.mxu0 0
    %188 = vmatpush1.bf16.msra.mxu0 0
    %189 = vmatprep.subr.bf16.mxu0 0
    %190 = vmatpush1.bf16.msra.mxu0 0
    %191 = vmatprep.mubr.bf16.mxu0 0
    %192 = vmatmul.mubr.bf16.gmra.mrb[0].mxu0 %v157
    %v193 = vpop.f32.mrb[0].mxu0
    %v194 = vadd.f32 %v141, %v193
    %v195 = vpop.f32.mrb[0].mxu0
    %v196 = vpop.f32.mrb[0].mxu0
    %v197 = vpop.f32.mrb[0].mxu0
    %198 = vdwg.mxu0
    %v200 = vcombine.high %v194, %v194
    %v202 = vunpack.c.l.s4 1966171168
    %v203 = vunpack.c.0.s8 %v202
    %v204 = vlaneseq
    %v205 = vshrl.u32 %v204, 7
    %v206 = vsub.s32 %v203, %v205
    %v207 = vrot.slane %v194, %v206
    %v209 = vunpack.c.l.s4 1966171168
    %v210 = vunpack.c.0.s8 %v209
    %v211 = vlaneseq
    %v212 = vshrl.u32 %v211, 7
    %v213 = vsub.s32 %v210, %v212
    %v214 = vrot.slane %v200, %v213
    %v215 = vcombine.high %v207, %v207
    %v216 = vcombine.high %v214, %v214
    %v218 = vunpack.c.l.s4 1966171168
    %v219 = vunpack.c.0.s8 %v218
    %v220 = vlaneseq
    %v221 = vshrl.u32 %v220, 7
    %v222 = vsub.s32 %v219, %v221
    %v223 = vrot.slane %v207, %v222
    %v225 = vunpack.c.l.s4 1966171168
    %v226 = vunpack.c.0.s8 %v225
    %v227 = vlaneseq
    %v228 = vshrl.u32 %v227, 7
    %v229 = vsub.s32 %v226, %v228
    %v230 = vrot.slane %v214, %v229
    %v232 = vunpack.c.l.s4 1966171168
    %v233 = vunpack.c.0.s8 %v232
    %v234 = vlaneseq
    %v235 = vshrl.u32 %v234, 7
    %v236 = vsub.s32 %v233, %v235
    %v237 = vrot.slane %v215, %v236
    %v239 = vunpack.c.l.s4 1966171168
    %v240 = vunpack.c.0.s8 %v239
    %v241 = vlaneseq
    %v242 = vshrl.u32 %v241, 7
    %v243 = vsub.s32 %v240, %v242
    %v244 = vrot.slane %v216, %v243
    %v245 = vcombine.high %v223, %v223
    %v246 = vcombine.high %v230, %v230
    %v247 = vcombine.high %v237, %v237
    %v248 = vcombine.high %v244, %v244
    %v249 = vlaneseq
    %v250 = vshrl.u32 %v249, 7
    %v251 = vsub.s32 0, %v250
    %v252 = vrot.slane %v223, %v251
    %v253 = vlaneseq
    %v254 = vshrl.u32 %v253, 7
    %v255 = vsub.s32 0, %v254
    %v256 = vrot.slane %v237, %v255
    %v257 = vlaneseq
    %v258 = vshrl.u32 %v257, 7
    %v259 = vsub.s32 0, %v258
    %v260 = vrot.slane %v245, %v259
    %v261 = vlaneseq
    %v262 = vshrl.u32 %v261, 7
    %v263 = vsub.s32 0, %v262
    %v264 = vrot.slane %v247, %v263
    %v265 = vlaneseq
    %v266 = vshrl.u32 %v265, 7
    %v267 = vsub.s32 0, %v266
    %v268 = vrot.slane %v230, %v267
    %v269 = vlaneseq
    %v270 = vshrl.u32 %v269, 7
    %v271 = vsub.s32 0, %v270
    %v272 = vrot.slane %v244, %v271
    %v273 = vlaneseq
    %v274 = vshrl.u32 %v273, 7
    %v275 = vsub.s32 0, %v274
    %v276 = vrot.slane %v246, %v275
    %v277 = vlaneseq
    %v278 = vshrl.u32 %v277, 7
    %v279 = vsub.s32 0, %v278
    %v280 = vrot.slane %v248, %v279
    %v297 = vunpack.c.l.b16 %v114
    %v298 = vunpack.c.l.b16 %v115
    %v299 = vunpack.c.l.b16 %v116
    %v300 = vunpack.c.l.b16 %v117
    %v301 = vunpack.c.l.b16 %v118
    %v302 = vunpack.c.l.b16 %v119
    %v303 = vunpack.c.l.b16 %v120
    %v304 = vunpack.c.l.b16 %v121
    %v305 = vunpack.c.l.b16 %v122
    %v306 = vunpack.c.l.b16 %v123
    %v307 = vunpack.c.l.b16 %v124
    %v308 = vunpack.c.l.b16 %v125
    %v309 = vunpack.c.l.b16 %v126
    %v310 = vunpack.c.l.b16 %v127
    %v311 = vunpack.c.l.b16 %v128
    %v312 = vunpack.c.l.b16 %v129
    %v313 = vpack.c.b16 %v298, %v297
    %v314 = vpack.c.b16 %v300, %v299
    %v315 = vpack.c.b16 %v302, %v301
    %v316 = vpack.c.b16 %v304, %v303
    %v317 = vpack.c.b16 %v306, %v305
    %v318 = vpack.c.b16 %v308, %v307
    %v319 = vpack.c.b16 %v310, %v309
    %v320 = vpack.c.b16 %v312, %v311
    %v329 = vcombine.low %v252, %v256
    %v330 = vcombine.low %v260, %v264
    %v332 = vunpack.c.l.s4 1983009808
    %v333 = vunpack.c.0.s8 %v332
    %v334 = vlaneseq
    %v335 = vshrl.u32 %v334, 7
    %v336 = vsub.s32 %v333, %v335
    %v337 = vrot.slane %v329, %v336
    %v339 = vunpack.c.l.s4 1983009808
    %v340 = vunpack.c.0.s8 %v339
    %v341 = vlaneseq
    %v342 = vshrl.u32 %v341, 7
    %v343 = vsub.s32 %v340, %v342
    %v344 = vrot.slane %v330, %v343
    %v345 = vcombine.low %v337, %v344
    %v346 = vcombine.low %v268, %v272
    %v347 = vcombine.low %v276, %v280
    %v349 = vunpack.c.l.s4 1983009808
    %v350 = vunpack.c.0.s8 %v349
    %v351 = vlaneseq
    %v352 = vshrl.u32 %v351, 7
    %v353 = vsub.s32 %v350, %v352
    %v354 = vrot.slane %v346, %v353
    %v356 = vunpack.c.l.s4 1983009808
    %v357 = vunpack.c.0.s8 %v356
    %v358 = vlaneseq
    %v359 = vshrl.u32 %v358, 7
    %v360 = vsub.s32 %v357, %v359
    %v361 = vrot.slane %v347, %v360
    %v362 = vcombine.low %v354, %v361
    %365 = vmatprep.subr.bf16.mxu0 0
    %366 = vmatpush1.bf16.msra.mxu0 %v313
    %367 = vmatprep.subr.bf16.mxu0 0
    %368 = vmatpush1.bf16.msra.mxu0 %v314
    %369 = vmatprep.subr.bf16.mxu0 0
    %370 = vmatpush1.bf16.msra.mxu0 %v315
    %371 = vmatprep.subr.bf16.mxu0 0
    %372 = vmatpush1.bf16.msra.mxu0 %v316
    %373 = vmatprep.subr.bf16.mxu0 0
    %374 = vmatpush1.bf16.msra.mxu0 %v317
    %375 = vmatprep.subr.bf16.mxu0 0
    %376 = vmatpush1.bf16.msra.mxu0 %v318
    %377 = vmatprep.subr.bf16.mxu0 0
    %378 = vmatpush1.bf16.msra.mxu0 %v319
    %379 = vmatprep.subr.bf16.mxu0 0
    %380 = vmatpush1.bf16.msra.mxu0 %v320
    %381 = vmatprep.subr.bf16.mxu0 0
    %382 = vmatpush1.bf16.msra.mxu0 0
    %383 = vmatprep.subr.bf16.mxu0 0
    %384 = vmatpush1.bf16.msra.mxu0 0
    %385 = vmatprep.subr.bf16.mxu0 0
    %386 = vmatpush1.bf16.msra.mxu0 0
    %387 = vmatprep.subr.bf16.mxu0 0
    %388 = vmatpush1.bf16.msra.mxu0 0
    %389 = vmatprep.subr.bf16.mxu0 0
    %390 = vmatpush1.bf16.msra.mxu0 0
    %391 = vmatprep.subr.bf16.mxu0 0
    %392 = vmatpush1.bf16.msra.mxu0 0
    %393 = vmatprep.subr.bf16.mxu0 0
    %394 = vmatpush1.bf16.msra.mxu0 0
    %395 = vmatprep.subr.bf16.mxu0 0
    %396 = vmatpush1.bf16.msra.mxu0 0
    %397 = vmatprep.mubr.bf16.mxu0 0
    %398 = vmatmul.mubr.bf16.gmra.mrb[0].mxu0 %v113
    %v399 = vpop.f32.mrb[0].mxu0
    %v400 = vadd.f32 %v345, %v399
    %v401 = vpop.f32.mrb[0].mxu0
    %v402 = vpop.f32.mrb[0].mxu0
    %v403 = vadd.f32 %v362, %v402
    %v404 = vpop.f32.mrb[0].mxu0
    %405 = vdwg.mxu0
    %v406 = vmax.f32 %v400, 0.0
    %v407 = vmax.f32 %v403, 0.0
    %v408 = vpack.c.bf16 %v407, %v406
    %v409 = vld [vmem:[#allocation10] sm:$0xf]
    %v410 = vld [vmem:[#allocation10 + $0x4] sm:$0xf]
    %v411 = vld [vmem:[#allocation10 + $0x8] sm:$0xf]
    %v412 = vld [vmem:[#allocation10 + $0xc] sm:$0xf]
    %v413 = vld [vmem:[#allocation10 + $0x10] sm:$0xf]
    %v414 = vld [vmem:[#allocation10 + $0x14] sm:$0xf]
    %v415 = vld [vmem:[#allocation10 + $0x18] sm:$0xf]
    %v416 = vld [vmem:[#allocation10 + $0x1c] sm:$0xf]
    %v417 = vld [vmem:[#allocation10 + $0x20] sm:$0xf]
    %v418 = vld [vmem:[#allocation10 + $0x24] sm:$0xf]
    %v419 = vld [vmem:[#allocation10 + $0x28] sm:$0xf]
    %v420 = vld [vmem:[#allocation10 + $0x2c] sm:$0xf]
    %v421 = vld [vmem:[#allocation10 + $0x30] sm:$0xf]
    %v422 = vld [vmem:[#allocation10 + $0x34] sm:$0xf]
    %v423 = vld [vmem:[#allocation10 + $0x38] sm:$0xf]
    %v424 = vld [vmem:[#allocation10 + $0x3c] sm:$0xf]
    %v425 = vld [vmem:[%s6] sm:$0x1]
    %v427 = vlaneseq
    %v428 = vshrl.u32 %v427, 7
    %v429 = vsub.s32 0, %v428
    %v430 = vrot.slane %v425, %v429
    %v448 = vunpack.c.l.b16 %v409
    %v449 = vunpack.c.l.b16 %v410
    %v450 = vunpack.c.l.b16 %v411
    %v451 = vunpack.c.l.b16 %v412
    %v452 = vunpack.c.l.b16 %v413
    %v453 = vunpack.c.l.b16 %v414
    %v454 = vunpack.c.l.b16 %v415
    %v455 = vunpack.c.l.b16 %v416
    %v456 = vunpack.c.l.b16 %v417
    %v457 = vunpack.c.l.b16 %v418
    %v458 = vunpack.c.l.b16 %v419
    %v459 = vunpack.c.l.b16 %v420
    %v460 = vunpack.c.l.b16 %v421
    %v461 = vunpack.c.l.b16 %v422
    %v462 = vunpack.c.l.b16 %v423
    %v463 = vunpack.c.l.b16 %v424
    %v464 = vpack.c.b16 %v449, %v448
    %v465 = vpack.c.b16 %v451, %v450
    %v466 = vpack.c.b16 %v453, %v452
    %v467 = vpack.c.b16 %v455, %v454
    %v468 = vpack.c.b16 %v457, %v456
    %v469 = vpack.c.b16 %v459, %v458
    %v470 = vpack.c.b16 %v461, %v460
    %v471 = vpack.c.b16 %v463, %v462
    %480 = vmatprep.subr.bf16.mxu0 0
    %481 = vmatpush1.bf16.msra.mxu0 %v464
    %482 = vmatprep.subr.bf16.mxu0 0
    %483 = vmatpush1.bf16.msra.mxu0 %v465
    %484 = vmatprep.subr.bf16.mxu0 0
    %485 = vmatpush1.bf16.msra.mxu0 %v466
    %486 = vmatprep.subr.bf16.mxu0 0
    %487 = vmatpush1.bf16.msra.mxu0 %v467
    %488 = vmatprep.subr.bf16.mxu0 0
    %489 = vmatpush1.bf16.msra.mxu0 %v468
    %490 = vmatprep.subr.bf16.mxu0 0
    %491 = vmatpush1.bf16.msra.mxu0 %v469
    %492 = vmatprep.subr.bf16.mxu0 0
    %493 = vmatpush1.bf16.msra.mxu0 %v470
    %494 = vmatprep.subr.bf16.mxu0 0
    %495 = vmatpush1.bf16.msra.mxu0 %v471
    %496 = vmatprep.subr.bf16.mxu0 0
    %497 = vmatpush1.bf16.msra.mxu0 0
    %498 = vmatprep.subr.bf16.mxu0 0
    %499 = vmatpush1.bf16.msra.mxu0 0
    %500 = vmatprep.subr.bf16.mxu0 0
    %501 = vmatpush1.bf16.msra.mxu0 0
    %502 = vmatprep.subr.bf16.mxu0 0
    %503 = vmatpush1.bf16.msra.mxu0 0
    %504 = vmatprep.subr.bf16.mxu0 0
    %505 = vmatpush1.bf16.msra.mxu0 0
    %506 = vmatprep.subr.bf16.mxu0 0
    %507 = vmatpush1.bf16.msra.mxu0 0
    %508 = vmatprep.subr.bf16.mxu0 0
    %509 = vmatpush1.bf16.msra.mxu0 0
    %510 = vmatprep.subr.bf16.mxu0 0
    %511 = vmatpush1.bf16.msra.mxu0 0
    %512 = vmatprep.mubr.bf16.mxu0 0
    %513 = vmatmul.mubr.bf16.gmra.mrb[0].mxu0 %v408
    %v514 = vpop.f32.mrb[0].mxu0
    %v515 = vadd.f32 %v430, %v514
    %v516 = vpop.f32.mrb[0].mxu0
    %v517 = vpop.f32.mrb[0].mxu0
    %v518 = vadd.f32 %v430, %v517
    %v519 = vpop.f32.mrb[0].mxu0
    %520 = vdwg.mxu0
    %521 = vmax.xlane.f32.xlu0 %v515
    %v522 = vpop.xlane.xlu0 %521
    %523 = vmax.xlane.f32.xlu0 %v518
    %v524 = vpop.xlane.xlu0 %523
    %v525 = vsub.f32 %v515, %v522
    %v526 = vsub.f32 %v518, %v524
    %v527 = vmul.f32 %v525, 1.442695
    %v528 = vpow.pop %v527
    %v529 = vmul.f32 %v526, 1.442695
    %v530 = vpow.pop %v529
    %v531 = vpack.c.bf16 %v530, %v528
    %v532 = vld [vmem:[#allocation11] sm:$0xf]
    %v533 = vld [vmem:[#allocation11 + $0x4] sm:$0xf]
    %v534 = vld [vmem:[#allocation11 + $0x8] sm:$0xf]
    %v535 = vld [vmem:[#allocation11 + $0xc] sm:$0xf]
    %v536 = vld [vmem:[#allocation11 + $0x10] sm:$0xf]
    %v537 = vld [vmem:[#allocation11 + $0x14] sm:$0xf]
    %v538 = vld [vmem:[#allocation11 + $0x18] sm:$0xf]
    %v539 = vld [vmem:[#allocation11 + $0x1c] sm:$0xf]
    %v540 = vld [vmem:[#allocation11 + $0x20] sm:$0xf]
    %v541 = vld [vmem:[#allocation11 + $0x24] sm:$0xf]
    %v542 = vld [vmem:[#allocation11 + $0x28] sm:$0xf]
    %v543 = vld [vmem:[#allocation11 + $0x2c] sm:$0xf]
    %v544 = vld [vmem:[#allocation11 + $0x30] sm:$0xf]
    %v545 = vld [vmem:[#allocation11 + $0x34] sm:$0xf]
    %v546 = vld [vmem:[#allocation11 + $0x38] sm:$0xf]
    %v547 = vld [vmem:[#allocation11 + $0x3c] sm:$0xf]
    %v564 = vunpack.c.l.b16 %v532
    %v565 = vunpack.c.l.b16 %v533
    %v566 = vunpack.c.l.b16 %v534
    %v567 = vunpack.c.l.b16 %v535
    %v568 = vunpack.c.l.b16 %v536
    %v569 = vunpack.c.l.b16 %v537
    %v570 = vunpack.c.l.b16 %v538
    %v571 = vunpack.c.l.b16 %v539
    %v572 = vunpack.c.l.b16 %v540
    %v573 = vunpack.c.l.b16 %v541
    %v574 = vunpack.c.l.b16 %v542
    %v575 = vunpack.c.l.b16 %v543
    %v576 = vunpack.c.l.b16 %v544
    %v577 = vunpack.c.l.b16 %v545
    %v578 = vunpack.c.l.b16 %v546
    %v579 = vunpack.c.l.b16 %v547
    %v580 = vpack.c.b16 %v565, %v564
    %v581 = vpack.c.b16 %v567, %v566
    %v582 = vpack.c.b16 %v569, %v568
    %v583 = vpack.c.b16 %v571, %v570
    %v584 = vpack.c.b16 %v573, %v572
    %v585 = vpack.c.b16 %v575, %v574
    %v586 = vpack.c.b16 %v577, %v576
    %v587 = vpack.c.b16 %v579, %v578
    %596 = vmatprep.subr.bf16.mxu0 0
    %597 = vmatpush1.bf16.msra.mxu0 %v580
    %598 = vmatprep.subr.bf16.mxu0 0
    %599 = vmatpush1.bf16.msra.mxu0 %v581
    %600 = vmatprep.subr.bf16.mxu0 0
    %601 = vmatpush1.bf16.msra.mxu0 %v582
    %602 = vmatprep.subr.bf16.mxu0 0
    %603 = vmatpush1.bf16.msra.mxu0 %v583
    %604 = vmatprep.subr.bf16.mxu0 0
    %605 = vmatpush1.bf16.msra.mxu0 %v584
    %606 = vmatprep.subr.bf16.mxu0 0
    %607 = vmatpush1.bf16.msra.mxu0 %v585
    %608 = vmatprep.subr.bf16.mxu0 0
    %609 = vmatpush1.bf16.msra.mxu0 %v586
    %610 = vmatprep.subr.bf16.mxu0 0
    %611 = vmatpush1.bf16.msra.mxu0 %v587
    %612 = vmatprep.subr.bf16.mxu0 0
    %613 = vmatpush1.bf16.msra.mxu0 0
    %614 = vmatprep.subr.bf16.mxu0 0
    %615 = vmatpush1.bf16.msra.mxu0 0
    %616 = vmatprep.subr.bf16.mxu0 0
    %617 = vmatpush1.bf16.msra.mxu0 0
    %618 = vmatprep.subr.bf16.mxu0 0
    %619 = vmatpush1.bf16.msra.mxu0 0
    %620 = vmatprep.subr.bf16.mxu0 0
    %621 = vmatpush1.bf16.msra.mxu0 0
    %622 = vmatprep.subr.bf16.mxu0 0
    %623 = vmatpush1.bf16.msra.mxu0 0
    %624 = vmatprep.subr.bf16.mxu0 0
    %625 = vmatpush1.bf16.msra.mxu0 0
    %626 = vmatprep.subr.bf16.mxu0 0
    %627 = vmatpush1.bf16.msra.mxu0 0
    %628 = vmatprep.mubr.bf16.mxu0 0
    %629 = vmatmul.mubr.bf16.gmra.mrb[0].mxu0 %v531
    %v630 = vpop.f32.mrb[0].mxu0
    %v631 = vadd.f32 0.0, %v630
    %v632 = vpop.f32.mrb[0].mxu0
    %v633 = vpop.f32.mrb[0].mxu0
    %v634 = vadd.f32 0.0, %v633
    %v635 = vpop.f32.mrb[0].mxu0
    %636 = vdwg.mxu0
    %v637 = vrcp.pop %v631
    %v638 = vrcp.pop %v634
    %v639 = vmul.f32 %v528, %v637
    %v640 = vmul.f32 %v530, %v638
    %v641 = vmul.f32 %v639, %v111
    %v642 = vmul.f32 %v640, %v112
    %643 = vrot.lane.b32.xlu0 %v641, 64
    %v644 = vpop.permute.xlu0 %643
    %645 = vrot.lane.b32.xlu0 %v642, 64
    %v646 = vpop.permute.xlu0 %645
    %v647 = vadd.f32 %v641, %v644
    %v648 = vadd.f32 %v642, %v646
    %649 = vrot.lane.b32.xlu0 %v647, 32
    %v650 = vpop.permute.xlu0 %649
    %651 = vrot.lane.b32.xlu0 %v648, 32
    %v652 = vpop.permute.xlu0 %651
    %v653 = vadd.f32 %v647, %v650
    %v654 = vadd.f32 %v648, %v652
    %v657 = vcombine.high %v653, %v653
    %v659 = vunpack.c.l.s4 1983009808
    %v660 = vunpack.c.0.s8 %v659
    %v661 = vlaneseq
    %v662 = vshrl.u32 %v661, 7
    %v663 = vsub.s32 %v660, %v662
    %v664 = vrot.slane %v653, %v663
    %v666 = vunpack.c.l.s4 1983009808
    %v667 = vunpack.c.0.s8 %v666
    %v668 = vlaneseq
    %v669 = vshrl.u32 %v668, 7
    %v670 = vsub.s32 %v667, %v669
    %v671 = vrot.slane %v657, %v670
    %v672 = vcombine.high %v664, %v664
    %v673 = vcombine.high %v671, %v671
    %v674 = vcombine.high %v654, %v654
    %v676 = vunpack.c.l.s4 1983009808
    %v677 = vunpack.c.0.s8 %v676
    %v678 = vlaneseq
    %v679 = vshrl.u32 %v678, 7
    %v680 = vsub.s32 %v677, %v679
    %v681 = vrot.slane %v654, %v680
    %v683 = vunpack.c.l.s4 1983009808
    %v684 = vunpack.c.0.s8 %v683
    %v685 = vlaneseq
    %v686 = vshrl.u32 %v685, 7
    %v687 = vsub.s32 %v684, %v686
    %v688 = vrot.slane %v674, %v687
    %v689 = vcombine.high %v681, %v681
    %v690 = vcombine.high %v688, %v688
    %vm699 = vcmask 254976
    %v700 = vsel %vm699, %v664, 0.0
    %v701 = vrot.slane %v700, 4
    %v702 = vadd.f32 %v700, %v701
    %v703 = vrot.slane %v702, 2
    %v704 = vadd.f32 %v702, %v703
    %v705 = vrot.slane %v704, 1
    %v706 = vadd.f32 %v704, %v705
    %v707 = vsel %vm699, %v672, 0.0
    %v708 = vrot.slane %v707, 4
    %v709 = vadd.f32 %v707, %v708
    %v710 = vrot.slane %v709, 2
    %v711 = vadd.f32 %v709, %v710
    %v712 = vrot.slane %v711, 1
    %v713 = vadd.f32 %v711, %v712
    %v714 = vsel %vm699, %v671, 0.0
    %v715 = vrot.slane %v714, 4
    %v716 = vadd.f32 %v714, %v715
    %v717 = vrot.slane %v716, 2
    %v718 = vadd.f32 %v716, %v717
    %v719 = vrot.slane %v718, 1
    %v720 = vadd.f32 %v718, %v719
    %v721 = vsel %vm699, %v673, 0.0
    %v722 = vrot.slane %v721, 4
    %v723 = vadd.f32 %v721, %v722
    %v724 = vrot.slane %v723, 2
    %v725 = vadd.f32 %v723, %v724
    %v726 = vrot.slane %v725, 1
    %v727 = vadd.f32 %v725, %v726
    %v728 = vsel %vm699, %v681, 0.0
    %v729 = vrot.slane %v728, 4
    %v730 = vadd.f32 %v728, %v729
    %v731 = vrot.slane %v730, 2
    %v732 = vadd.f32 %v730, %v731
    %v733 = vrot.slane %v732, 1
    %v734 = vadd.f32 %v732, %v733
    %v735 = vsel %vm699, %v689, 0.0
    %v736 = vrot.slane %v735, 4
    %v737 = vadd.f32 %v735, %v736
    %v738 = vrot.slane %v737, 2
    %v739 = vadd.f32 %v737, %v738
    %v740 = vrot.slane %v739, 1
    %v741 = vadd.f32 %v739, %v740
    %v742 = vsel %vm699, %v688, 0.0
    %v743 = vrot.slane %v742, 4
    %v744 = vadd.f32 %v742, %v743
    %v745 = vrot.slane %v744, 2
    %v746 = vadd.f32 %v744, %v745
    %v747 = vrot.slane %v746, 1
    %v748 = vadd.f32 %v746, %v747
    %v749 = vsel %vm699, %v690, 0.0
    %v750 = vrot.slane %v749, 4
    %v751 = vadd.f32 %v749, %v750
    %v752 = vrot.slane %v751, 2
    %v753 = vadd.f32 %v751, %v752
    %v754 = vrot.slane %v753, 1
    %v755 = vadd.f32 %v753, %v754
    %vm764 = vcmask 1041409
    %v765 = vsel %vm764, %v713, %v706
    %vm766 = vcmask 1042434
    %v767 = vsel %vm766, %v720, %v765
    %vm768 = vcmask 1043459
    %v769 = vsel %vm768, %v727, %v767
    %vm770 = vcmask 1044484
    %v771 = vsel %vm770, %v734, %v769
    %vm772 = vcmask 1045509
    %v773 = vsel %vm772, %v741, %v771
    %vm774 = vcmask 1046534
    %v775 = vsel %vm774, %v748, %v773
    %vm776 = vcmask 1047559
    %v777 = vsel %vm776, %v755, %v775
    %779 = vst.msk [vmem:[#allocation13] sm:$0xff] %vm155, %v777
    // Predicated region
    $region58: #{tpu_custom_call.1} parent=1 // pred_check
      _
    $region59: #{tpu_custom_call.1} parent=1 // pred_check_branch
      %781 = sbr.rel (0) target = $region61
    $region60: #{tpu_custom_call.1} parent=1 // pred_region
      %s783 = ssub.s32 128, 128
      %784 = vsyncadd [#allocation4], %s783
      %s786 = sshll.u32 [#allocation13], 4
      %s787 = int_to_ptr.vmem [resolvable:$true] %s786
      %789 = dma.vmem_to_hbm [thread:$0]  %s787, 128, %s8, [#allocation4]
    $region61: #{tpu_custom_call.1} parent=1 // pred_fallthru
      _
    // Predicated region
    $region62: #{tpu_custom_call.1} parent=1 // pred_check
      _
    $region63: #{tpu_custom_call.1} parent=1 // pred_check_branch
      %791 = sbr.rel (0) target = $region65
    $region64: #{tpu_custom_call.1} parent=1 // pred_region
      %792 = dma.done [#allocation4], 128
    $region65: #{tpu_custom_call.1} parent=1 // pred_fallthru
      _
    %793 = vsyncpa [#allocation3], 1
    %794 = vsyncpa [#allocation6], 1
    %795 = vsyncpa [#allocation9], 1
    %796 = vsyncpa [#allocation12], 1
    %797 = vsyncpa [#allocation4], 1

</llo_original>
